<compile_context>
chip_gen: v7x
topology: tpu7x:2x2x1
jax: 0.10.0
libtpu: 0.0.40
codegen_flags: <defaults>
</compile_context>

<pallas_src>
import functools

import jax
import jax.numpy as jnp
from jax.experimental import pallas as pl
from jax.experimental.pallas import tpu as pltpu


def mlp_kernel(x_ref, w_ref, b_ref, o_ref, *, n_input, n_hidden, n_output, n_out_pad):
    # x tile: (n_input, TB) with batch on the lane axis; cast to bf16 for the MXU
    # (if the producer already hands over bf16, this is a no-op).
    x = x_ref[...].astype(jnp.bfloat16)

    # Static slices of the resident packed parameter slabs.  Row offsets are multiples
    # of 16 so these stay free views under bf16 sublane packing.
    w1t = w_ref[0:n_hidden, 0:n_input]                              # (n_hid, n_in)      bf16
    w2t = w_ref[n_hidden:2 * n_hidden, 0:n_hidden]                  # (n_hid, n_hid)     bf16
    w3t = w_ref[2 * n_hidden:2 * n_hidden + n_out_pad, 0:n_hidden]  # (n_out_pad, n_hid) bf16
    b1 = b_ref[0:n_hidden, :]                                       # (n_hid, 1) f32
    b2 = b_ref[n_hidden:2 * n_hidden, :]                            # (n_hid, 1) f32
    b3 = b_ref[2 * n_hidden:2 * n_hidden + n_out_pad, :]            # (n_out_pad, 1) f32

    def sigmoid_eup(h):
        # logistic(h) == 0.5 * (tanh(h/2) + 1); tanh goes to the EUP slot.
        return 0.5 * (jnp.tanh(0.5 * h) + 1.0)

    # hidden1 + sigmoid: (n_hid, n_in) @ (n_in, TB) -> (n_hid, TB), f32 accumulate.
    h = jnp.dot(w1t, x, preferred_element_type=jnp.float32) + b1
    h = sigmoid_eup(h).astype(jnp.bfloat16)
    # hidden2 + sigmoid
    h = jnp.dot(w2t, h, preferred_element_type=jnp.float32) + b2
    h = sigmoid_eup(h).astype(jnp.bfloat16)
    # predict (no activation); drop the zero-padded rows before the lane-dense store.
    y = jnp.dot(w3t, h, preferred_element_type=jnp.float32) + b3
    o_ref[...] = y[0:n_output, :].astype(o_ref.dtype)


def _batch_tile(batch, tb_max):
    """Lane-axis (batch) tile size: multiple of 128 when possible, >= 2 grid steps for
    v7x megacore when the batch is large enough, a single full-dim block otherwise."""
    if batch <= 128:
        return batch                                # single block; full last dim is always legal
    tb = (min(tb_max, batch) // 128) * 128          # lane-aligned tile
    if pl.cdiv(batch, tb) < 2:                      # give v7x's 2nd TensorCore work
        tb = max(128, (tb // 2 // 128) * 128)
    return tb


def net_forward(x_fm, w_slab, b_slab, *, n_input, n_hidden, n_output, tb=2048):
    """Feature-major forward pass.

    x_fm:   (n_input, B) activations (f32 or bf16), batch on the minor/lane axis.
    Returns (n_output, B) f32 — exactly the final shape, no wrapper pad/slice passes.
    """
    assert x_fm.shape[0] == n_input
    B = x_fm.shape[1]
    n_out_pad = w_slab.shape[0] - 2 * n_hidden

    tb_eff = _batch_tile(B, tb)
    n_blocks = pl.cdiv(B, tb_eff)

    kernel = functools.partial(mlp_kernel, n_input=n_input, n_hidden=n_hidden,
                               n_output=n_output, n_out_pad=n_out_pad)

    return pl.pallas_call(
        kernel,
        out_shape=jax.ShapeDtypeStruct((n_output, B), jnp.float32),
        grid_spec=pltpu.PrefetchScalarGridSpec(
            num_scalar_prefetch=0,
            grid=(n_blocks,),
            in_specs=[
                pl.BlockSpec((n_input, tb_eff), lambda i: (0, i)),    # lane-dense x tiles
                pl.BlockSpec(w_slab.shape, lambda i: (0, 0)),         # resident packed weights
                pl.BlockSpec(b_slab.shape, lambda i: (0, 0)),         # resident packed biases
            ],
            out_specs=pl.BlockSpec((n_output, tb_eff), lambda i: (0, i)),  # lane-dense output
        ),
        compiler_params=pltpu.CompilerParams(
            dimension_semantics=("parallel",),   # shard batch blocks across v7x's 2 TCs
        ),
    )(x_fm, w_slab, b_slab)


def init_params(key, n_input, n_hidden, n_output):
    """Deterministic init mirroring nn.Linear's U(-1/sqrt(fan_in), 1/sqrt(fan_in)).
    Weights stored as (in_features, out_features) so the reference is y = x @ W + b."""
    ks = jax.random.split(key, 6)

    def lin(kw, kb, fan_in, fan_out):
        bound = 1.0 / jnp.sqrt(fan_in)
        w = jax.random.uniform(kw, (fan_in, fan_out), jnp.float32, -bound, bound)
        b = jax.random.uniform(kb, (1, fan_out), jnp.float32, -bound, bound)
        return w, b

    w1, b1 = lin(ks[0], ks[1], n_input, n_hidden)
    w2, b2 = lin(ks[2], ks[3], n_hidden, n_hidden)
    w3, b3 = lin(ks[4], ks[5], n_hidden, n_output)
    return (w1, b1, w2, b2, w3, b3)


def pack_params(params):
    """Pack the 3 TRANSPOSED weight matrices into one bf16 slab (feature-major matmuls)
    and the 3 biases into one (rows, 1) f32 slab.  Row offsets 0 / n_hidden / 2*n_hidden
    must stay multiples of 16 (bf16 sublane packing) — true for n_hidden % 16 == 0."""
    w1, b1, w2, b2, w3, b3 = params
    n_input, n_hidden = w1.shape
    n_output = w3.shape[1]
    n_out_pad = ((n_output + 7) // 8) * 8
    rows = 2 * n_hidden + n_out_pad
    cols = max(n_input, n_hidden)

    w_slab = jnp.zeros((rows, cols), jnp.bfloat16)
    w_slab = w_slab.at[0:n_hidden, 0:n_input].set(w1.T.astype(jnp.bfloat16))
    w_slab = w_slab.at[n_hidden:2 * n_hidden, 0:n_hidden].set(w2.T.astype(jnp.bfloat16))
    w_slab = w_slab.at[2 * n_hidden:2 * n_hidden + n_output, 0:n_hidden].set(w3.T.astype(jnp.bfloat16))

    b_slab = jnp.zeros((rows, 1), jnp.float32)
    b_slab = b_slab.at[0:n_hidden, 0].set(b1.reshape(-1))
    b_slab = b_slab.at[n_hidden:2 * n_hidden, 0].set(b2.reshape(-1))
    b_slab = b_slab.at[2 * n_hidden:2 * n_hidden + n_output, 0].set(b3.reshape(-1))
    return w_slab, b_slab


def net_forward_ref(x, params):
    """Pure-JAX f32 reference (matches the PyTorch module); x is (B, n_input)."""
    w1, b1, w2, b2, w3, b3 = params
    h = jax.nn.sigmoid(x @ w1 + b1)
    h = jax.nn.sigmoid(h @ w2 + b2)
    return h @ w3 + b3


if __name__ == "__main__":
    n_input, n_hidden, n_output = 16, 32, 4

    key = jax.random.PRNGKey(0)
    k_x, k_p = jax.random.split(key)
    params = init_params(k_p, n_input, n_hidden, n_output)
    w_slab, b_slab = pack_params(params)

    # batch=8:   single full-dim block.
    # batch=200: ragged last block (verifies Pallas partial-block masking on read+write).
    # batch=256: two 128-lane blocks (exercises the v7x megacore split).
    for batch in (8, 200, 256):
        kx = jax.random.fold_in(k_x, batch)
        x_fm = jax.random.normal(kx, (n_input, batch), jnp.float32)   # feature-major input
        out = net_forward(x_fm, w_slab, b_slab,
                          n_input=n_input, n_hidden=n_hidden, n_output=n_output)
        out = jax.block_until_ready(out)

        ref = net_forward_ref(x_fm.T, params).T                       # (n_output, batch)
        assert out.shape == (n_output, batch), out.shape
        # bf16 matmul operands (f32 accumulation) => loosened tolerance vs the f32 reference.
        assert jnp.allclose(out, ref, atol=5e-2, rtol=5e-2), (batch, out, ref)

    print("KERNEL_OK")
</pallas_src>

<mosaic_0001>
module attributes {stable_mosaic.version = 11 : i64} {
  func.func @mlp_kernel(%arg0: i32, %arg1: memref<16x8xf32, #tpu.memory_space<vmem>>, %arg2: memref<72x32xbf16, #tpu.memory_space<vmem>>, %arg3: memref<72x1xf32, #tpu.memory_space<vmem>>, %arg4: memref<4x8xf32, #tpu.memory_space<vmem>>) attributes {dimension_semantics = [#tpu.dimension_semantics<parallel>], iteration_bounds = array<i64: 1>, scalar_prefetch = 0 : i64, scratch_operands = 0 : i64, tpu.core_type = #tpu.core_type<tc>, window_params = [{transform_indices = @transform_0, window_bounds = array<i64: 16, 8>}, {pipeline_mode = #tpu.pipeline_mode<synchronous>, transform_indices = @transform_1, window_bounds = array<i64: 72, 32>}, {pipeline_mode = #tpu.pipeline_mode<synchronous>, transform_indices = @transform_2, window_bounds = array<i64: 72, 1>}, {transform_indices = @transform_3, window_bounds = array<i64: 4, 8>}]} {
    %c0 = arith.constant 0 : index
    %c0_0 = arith.constant 0 : index
    %0 = vector.load %arg1[%c0, %c0_0] : memref<16x8xf32, #tpu.memory_space<vmem>>, vector<16x8xf32>
    %1 = arith.truncf %0 : vector<16x8xf32> to vector<16x8xbf16>
    %c0_1 = arith.constant 0 : index
    %c0_2 = arith.constant 0 : index
    %2 = vector.load %arg2[%c0_1, %c0_2] : memref<72x32xbf16, #tpu.memory_space<vmem>>, vector<32x16xbf16>
    %c32 = arith.constant 32 : index
    %c0_3 = arith.constant 0 : index
    %3 = vector.load %arg2[%c32, %c0_3] : memref<72x32xbf16, #tpu.memory_space<vmem>>, vector<32x32xbf16>
    %c64 = arith.constant 64 : index
    %c0_4 = arith.constant 0 : index
    %4 = vector.load %arg2[%c64, %c0_4] : memref<72x32xbf16, #tpu.memory_space<vmem>>, vector<8x32xbf16>
    %c0_5 = arith.constant 0 : index
    %c0_6 = arith.constant 0 : index
    %5 = vector.load %arg3[%c0_5, %c0_6] : memref<72x1xf32, #tpu.memory_space<vmem>>, vector<32x1xf32>
    %c32_7 = arith.constant 32 : index
    %c0_8 = arith.constant 0 : index
    %6 = vector.load %arg3[%c32_7, %c0_8] : memref<72x1xf32, #tpu.memory_space<vmem>>, vector<32x1xf32>
    %c64_9 = arith.constant 64 : index
    %c0_10 = arith.constant 0 : index
    %7 = vector.load %arg3[%c64_9, %c0_10] : memref<72x1xf32, #tpu.memory_space<vmem>>, vector<8x1xf32>
    %cst = arith.constant dense<0.000000e+00> : vector<32x8xf32>
    %8 = tpu.matmul %2, %1, %cst {dimension_numbers = #tpu.dot_dimension_numbers<[1], [0], [0], [1], [0, 0, 1, 1], [], []>} : vector<32x16xbf16>, vector<16x8xbf16>, vector<32x8xf32> -> vector<32x8xf32>
    %9 = vector.broadcast %5 : vector<32x1xf32> to vector<32x8xf32>
    %10 = arith.addf %8, %9 : vector<32x8xf32>
    %cst_11 = arith.constant 5.000000e-01 : f32
    %11 = vector.broadcast %cst_11 : f32 to vector<32x8xf32>
    %12 = arith.mulf %11, %10 : vector<32x8xf32>
    %13 = math.tanh %12 : vector<32x8xf32>
    %cst_12 = arith.constant 1.000000e+00 : f32
    %14 = vector.broadcast %cst_12 : f32 to vector<32x8xf32>
    %15 = arith.addf %13, %14 : vector<32x8xf32>
    %cst_13 = arith.constant 5.000000e-01 : f32
    %16 = vector.broadcast %cst_13 : f32 to vector<32x8xf32>
    %17 = arith.mulf %16, %15 : vector<32x8xf32>
    %18 = arith.truncf %17 : vector<32x8xf32> to vector<32x8xbf16>
    %cst_14 = arith.constant dense<0.000000e+00> : vector<32x8xf32>
    %19 = tpu.matmul %3, %18, %cst_14 {dimension_numbers = #tpu.dot_dimension_numbers<[1], [0], [0], [1], [0, 0, 1, 1], [], []>} : vector<32x32xbf16>, vector<32x8xbf16>, vector<32x8xf32> -> vector<32x8xf32>
    %20 = vector.broadcast %6 : vector<32x1xf32> to vector<32x8xf32>
    %21 = arith.addf %19, %20 : vector<32x8xf32>
    %cst_15 = arith.constant 5.000000e-01 : f32
    %22 = vector.broadcast %cst_15 : f32 to vector<32x8xf32>
    %23 = arith.mulf %22, %21 : vector<32x8xf32>
    %24 = math.tanh %23 : vector<32x8xf32>
    %cst_16 = arith.constant 1.000000e+00 : f32
    %25 = vector.broadcast %cst_16 : f32 to vector<32x8xf32>
    %26 = arith.addf %24, %25 : vector<32x8xf32>
    %cst_17 = arith.constant 5.000000e-01 : f32
    %27 = vector.broadcast %cst_17 : f32 to vector<32x8xf32>
    %28 = arith.mulf %27, %26 : vector<32x8xf32>
    %29 = arith.truncf %28 : vector<32x8xf32> to vector<32x8xbf16>
    %cst_18 = arith.constant dense<0.000000e+00> : vector<8x8xf32>
    %30 = tpu.matmul %4, %29, %cst_18 {dimension_numbers = #tpu.dot_dimension_numbers<[1], [0], [0], [1], [0, 0, 1, 1], [], []>} : vector<8x32xbf16>, vector<32x8xbf16>, vector<8x8xf32> -> vector<8x8xf32>
    %31 = vector.broadcast %7 : vector<8x1xf32> to vector<8x8xf32>
    %32 = arith.addf %30, %31 : vector<8x8xf32>
    %33 = vector.extract_strided_slice %32 {offsets = [0, 0], sizes = [4, 8], strides = [1, 1]} : vector<8x8xf32> to vector<4x8xf32>
    %c0_19 = arith.constant 0 : index
    %c0_20 = arith.constant 0 : index
    %34 = vector.load %arg4[%c0_19, %c0_20] : memref<4x8xf32, #tpu.memory_space<vmem>>, vector<4x8xf32>
    tpu.vector_store %arg4[%c0_19, %c0_20], %33 {strides = array<i32>} : memref<4x8xf32, #tpu.memory_space<vmem>>, vector<4x8xf32>,
    return
  }
  func.func @transform_0(%arg0: i32) -> (i32, i32) {
    %c0_i32 = arith.constant 0 : i32
    %c0_i32_0 = arith.constant 0 : i32
    return %c0_i32, %arg0 : i32, i32
  }
  func.func @transform_1(%arg0: i32) -> (i32, i32) {
    %c0_i32 = arith.constant 0 : i32
    %c0_i32_0 = arith.constant 0 : i32
    %c0_i32_1 = arith.constant 0 : i32
    return %c0_i32, %c0_i32_0 : i32, i32
  }
  func.func @transform_2(%arg0: i32) -> (i32, i32) {
    %c0_i32 = arith.constant 0 : i32
    %c0_i32_0 = arith.constant 0 : i32
    %c0_i32_1 = arith.constant 0 : i32
    return %c0_i32, %c0_i32_0 : i32, i32
  }
  func.func @transform_3(%arg0: i32) -> (i32, i32) {
    %c0_i32 = arith.constant 0 : i32
    %c0_i32_0 = arith.constant 0 : i32
    return %c0_i32, %arg0 : i32, i32
  }
}

</mosaic_0001>

<llo_original>
// kernel: tpu_custom_call.1
$region0: #{tpu_custom_call.1}
  #allocation0 [shape = 'u32[]', space=smem, size = 0x4, offset = 0x4, fixed_abs, tag = 'smem constant byte address 0x4 - core index']
  #allocation1 [shape = 'u32[144,128]{1,0:T(1,128)}', space=vmem, size = 0x12000, scoped, tag = 'internal scratch']
  %s0 = inlined_call_operand.vmem [shape: f32[16,8], index: 0, kind: input, shape index: {}]
  %s1 = inlined_call_operand.vmem [shape: bf16[72,32], index: 1, kind: input, shape index: {}]
  %s2 = inlined_call_operand.vmem [shape: f32[72,1], index: 2, kind: input, shape index: {}]
  %s3 = inlined_call_operand.hbm [shape: f32[4,8], index: 3, kind: output, shape index: {}]
  %s4 = sld [smem:[#allocation0]]
  $region22: #{tpu_custom_call.1} parent=0
    _
  %s6 = ssub.s32 1, %s4
  %s7 = scalar_select 0, %s6, %s4
  $region1: #{tpu_custom_call.1} parent=0
    #allocation2 [shape = 'u8[2048]{0}', space=vmem, size = 0x800, scoped, tag = 'output window, operand 0, single buffered']
    #allocation3 [shape = 's32[1]{0}', space=sflag, size = 0x4, scoped, tag = 'scoped memory for tpu_custom_call.1']
    %8 = vsyncpa [#allocation3], 0
    // Predicated region
    $region2: #{tpu_custom_call.1} parent=1 // pred_check
      _
    $region3: #{tpu_custom_call.1} parent=1 // pred_check_branch
      %10 = sbr.rel (0) target = $region5
    $region4: #{tpu_custom_call.1} parent=1 // pred_region
      _
    $region5: #{tpu_custom_call.1} parent=1 // pred_fallthru
      _
    // Predicated region
    $region6: #{tpu_custom_call.1} parent=1 // pred_check
      _
    $region7: #{tpu_custom_call.1} parent=1 // pred_check_branch
      %12 = sbr.rel (0) target = $region9
    $region8: #{tpu_custom_call.1} parent=1 // pred_region
      _
    $region9: #{tpu_custom_call.1} parent=1 // pred_fallthru
      _
    // Predicated region
    $region10: #{tpu_custom_call.1} parent=1 // pred_check
      _
    $region11: #{tpu_custom_call.1} parent=1 // pred_check_branch
      %14 = sbr.rel (0) target = $region13
    $region12: #{tpu_custom_call.1} parent=1 // pred_region
      _
    $region13: #{tpu_custom_call.1} parent=1 // pred_fallthru
      _
    %v16 = vld [vmem:[%s0] sm:$0xff]
    %v17 = vld [vmem:[%s0 + $0x8] sm:$0xff]
    %v18 = vpack.c.bf16 %v17, %v16
    %v19 = vld [vmem:[%s1] sm:$0xf]
    %v20 = vld [vmem:[%s1 + $0x4] sm:$0xf]
    %v21 = vld [vmem:[%s1 + $0x8] sm:$0xf]
    %v22 = vld [vmem:[%s1 + $0xc] sm:$0xf]
    %v23 = vld [vmem:[%s1 + $0x10] sm:$0xf]
    %v24 = vld [vmem:[%s1 + $0x14] sm:$0xf]
    %v25 = vld [vmem:[%s1 + $0x18] sm:$0xf]
    %v26 = vld [vmem:[%s1 + $0x1c] sm:$0xf]
    %v27 = vld [vmem:[%s1 + $0x20] sm:$0xf]
    %v28 = vld [vmem:[%s2] sm:$0xff]
    %v29 = vld [vmem:[%s2 + $0x8] sm:$0xff]
    %v30 = vld [vmem:[%s2 + $0x10] sm:$0xff]
    %v31 = vld [vmem:[%s2 + $0x18] sm:$0xff]
    %v32 = vld [vmem:[%s2 + $0x20] sm:$0xff]
    %v33 = vld [vmem:[%s2 + $0x28] sm:$0xff]
    %v34 = vld [vmem:[%s2 + $0x30] sm:$0xff]
    %v35 = vld [vmem:[%s2 + $0x38] sm:$0xff]
    %v36 = vld [vmem:[%s2 + $0x40] sm:$0xff]
    %38 = vset.pattern.permute.xlu0 0
    %39 = vperm.xlu0 %38, %v28
    %v40 = vpop.permute.xlu0 %39
    %43 = vset.pattern.permute.xlu0 0
    %44 = vperm.xlu0 %43, %v29
    %v45 = vpop.permute.xlu0 %44
    %48 = vset.pattern.permute.xlu0 0
    %49 = vperm.xlu0 %48, %v30
    %v50 = vpop.permute.xlu0 %49
    %53 = vset.pattern.permute.xlu0 0
    %54 = vperm.xlu0 %53, %v31
    %v55 = vpop.permute.xlu0 %54
    %v61 = vunpack.c.l.b16 %v19
    %v62 = vunpack.c.l.b16 %v20
    %v63 = vunpack.c.l.b16 %v21
    %v64 = vunpack.c.l.b16 %v22
    %v65 = vpack.c.b16 %v62, %v61
    %v66 = vpack.c.b16 %v64, %v63
    %vm67 = vcmask 130048
    %v69 = vsel %vm67, %v65, 0
    %v72 = vsel %vm67, %v66, 0
    %74 = vmatprep.subr.bf16.mxu0 0
    %75 = vmatpush1.bf16.msra.mxu0 %v18
    %76 = vmatprep.subr.bf16.mxu0 0
    %77 = vmatpush1.bf16.msra.mxu0 0
    %78 = vmatprep.subr.bf16.mxu0 0
    %79 = vmatpush1.bf16.msra.mxu0 0
    %80 = vmatprep.subr.bf16.mxu0 0
    %81 = vmatpush1.bf16.msra.mxu0 0
    %82 = vmatprep.subr.bf16.mxu0 0
    %83 = vmatpush1.bf16.msra.mxu0 0
    %84 = vmatprep.subr.bf16.mxu0 0
    %85 = vmatpush1.bf16.msra.mxu0 0
    %86 = vmatprep.subr.bf16.mxu0 0
    %87 = vmatpush1.bf16.msra.mxu0 0
    %88 = vmatprep.subr.bf16.mxu0 0
    %89 = vmatpush1.bf16.msra.mxu0 0
    %90 = vmatprep.subr.bf16.mxu0 0
    %91 = vmatpush1.bf16.msra.mxu0 0
    %92 = vmatprep.subr.bf16.mxu0 0
    %93 = vmatpush1.bf16.msra.mxu0 0
    %94 = vmatprep.subr.bf16.mxu0 0
    %95 = vmatpush1.bf16.msra.mxu0 0
    %96 = vmatprep.subr.bf16.mxu0 0
    %97 = vmatpush1.bf16.msra.mxu0 0
    %98 = vmatprep.subr.bf16.mxu0 0
    %99 = vmatpush1.bf16.msra.mxu0 0
    %100 = vmatprep.subr.bf16.mxu0 0
    %101 = vmatpush1.bf16.msra.mxu0 0
    %102 = vmatprep.subr.bf16.mxu0 0
    %103 = vmatpush1.bf16.msra.mxu0 0
    %104 = vmatprep.subr.bf16.mxu0 0
    %105 = vmatpush1.bf16.msra.mxu0 0
    %106 = vmatprep.mubr.bf16.mxu0 0
    %107 = vmatmul.mubr.bf16.gmra.mrb[0].mxu0 %v69
    %v108 = vpop.f32.mrb[0].mxu0
    %v109 = vadd.f32 %v40, %v108
    %v110 = vpop.f32.mrb[0].mxu0
    %v111 = vpop.f32.mrb[0].mxu0
    %v112 = vadd.f32 %v45, %v111
    %v113 = vpop.f32.mrb[0].mxu0
    %114 = vmatprep.mubr.bf16.mxu0 0
    %115 = vmatmul.mubr.bf16.gmra.mrb[0].mxu0 %v72
    %v116 = vpop.f32.mrb[0].mxu0
    %v117 = vadd.f32 %v50, %v116
    %v118 = vpop.f32.mrb[0].mxu0
    %v119 = vpop.f32.mrb[0].mxu0
    %v120 = vadd.f32 %v55, %v119
    %v121 = vpop.f32.mrb[0].mxu0
    %122 = vdwg.mxu0
    %v123 = vmul.f32 %v109, 0.5
    %v124 = vmul.f32 %v112, 0.5
    %v125 = vmul.f32 %v117, 0.5
    %v126 = vmul.f32 %v120, 0.5
    %v127 = vtanh.pop %v123
    %v128 = vtanh.pop %v124
    %v129 = vtanh.pop %v125
    %v130 = vtanh.pop %v126
    %v131 = vadd.f32 %v127, 1.0
    %v132 = vadd.f32 %v128, 1.0
    %v133 = vadd.f32 %v129, 1.0
    %v134 = vadd.f32 %v130, 1.0
    %v135 = vmul.f32 %v131, 0.5
    %v136 = vmul.f32 %v132, 0.5
    %v137 = vmul.f32 %v133, 0.5
    %v138 = vmul.f32 %v134, 0.5
    %v139 = vpack.c.bf16 %v136, %v135
    %v140 = vpack.c.bf16 %v138, %v137
    %142 = vset.pattern.permute.xlu0 0
    %143 = vperm.xlu0 %142, %v32
    %v144 = vpop.permute.xlu0 %143
    %147 = vset.pattern.permute.xlu0 0
    %148 = vperm.xlu0 %147, %v33
    %v149 = vpop.permute.xlu0 %148
    %152 = vset.pattern.permute.xlu0 0
    %153 = vperm.xlu0 %152, %v34
    %v154 = vpop.permute.xlu0 %153
    %157 = vset.pattern.permute.xlu0 0
    %158 = vperm.xlu0 %157, %v35
    %v159 = vpop.permute.xlu0 %158
    %v165 = vunpack.c.l.b16 %v23
    %v166 = vunpack.c.l.b16 %v24
    %v167 = vunpack.c.l.b16 %v25
    %v168 = vunpack.c.l.b16 %v26
    %v169 = vpack.c.b16 %v166, %v165
    %v170 = vpack.c.b16 %v168, %v167
    %vm171 = vcmask 261120
    %v173 = vsel %vm171, %v169, 0
    %v176 = vsel %vm171, %v170, 0
    %178 = vmatprep.subr.bf16.mxu0 0
    %179 = vmatpush1.bf16.msra.mxu0 %v139
    %180 = vmatprep.subr.bf16.mxu0 0
    %181 = vmatpush1.bf16.msra.mxu0 %v140
    %182 = vmatprep.subr.bf16.mxu0 0
    %183 = vmatpush1.bf16.msra.mxu0 0
    %184 = vmatprep.subr.bf16.mxu0 0
    %185 = vmatpush1.bf16.msra.mxu0 0
    %186 = vmatprep.subr.bf16.mxu0 0
    %187 = vmatpush1.bf16.msra.mxu0 0
    %188 = vmatprep.subr.bf16.mxu0 0
    %189 = vmatpush1.bf16.msra.mxu0 0
    %190 = vmatprep.subr.bf16.mxu0 0
    %191 = vmatpush1.bf16.msra.mxu0 0
    %192 = vmatprep.subr.bf16.mxu0 0
    %193 = vmatpush1.bf16.msra.mxu0 0
    %194 = vmatprep.subr.bf16.mxu0 0
    %195 = vmatpush1.bf16.msra.mxu0 0
    %196 = vmatprep.subr.bf16.mxu0 0
    %197 = vmatpush1.bf16.msra.mxu0 0
    %198 = vmatprep.subr.bf16.mxu0 0
    %199 = vmatpush1.bf16.msra.mxu0 0
    %200 = vmatprep.subr.bf16.mxu0 0
    %201 = vmatpush1.bf16.msra.mxu0 0
    %202 = vmatprep.subr.bf16.mxu0 0
    %203 = vmatpush1.bf16.msra.mxu0 0
    %204 = vmatprep.subr.bf16.mxu0 0
    %205 = vmatpush1.bf16.msra.mxu0 0
    %206 = vmatprep.subr.bf16.mxu0 0
    %207 = vmatpush1.bf16.msra.mxu0 0
    %208 = vmatprep.subr.bf16.mxu0 0
    %209 = vmatpush1.bf16.msra.mxu0 0
    %210 = vmatprep.mubr.bf16.mxu0 0
    %211 = vmatmul.mubr.bf16.gmra.mrb[0].mxu0 %v173
    %v212 = vpop.f32.mrb[0].mxu0
    %v213 = vadd.f32 %v144, %v212
    %v214 = vpop.f32.mrb[0].mxu0
    %v215 = vpop.f32.mrb[0].mxu0
    %v216 = vadd.f32 %v149, %v215
    %v217 = vpop.f32.mrb[0].mxu0
    %218 = vmatprep.mubr.bf16.mxu0 0
    %219 = vmatmul.mubr.bf16.gmra.mrb[0].mxu0 %v176
    %v220 = vpop.f32.mrb[0].mxu0
    %v221 = vadd.f32 %v154, %v220
    %v222 = vpop.f32.mrb[0].mxu0
    %v223 = vpop.f32.mrb[0].mxu0
    %v224 = vadd.f32 %v159, %v223
    %v225 = vpop.f32.mrb[0].mxu0
    %226 = vdwg.mxu0
    %v227 = vmul.f32 %v213, 0.5
    %v228 = vmul.f32 %v216, 0.5
    %v229 = vmul.f32 %v221, 0.5
    %v230 = vmul.f32 %v224, 0.5
    %v231 = vtanh.pop %v227
    %v232 = vtanh.pop %v228
    %v233 = vtanh.pop %v229
    %v234 = vtanh.pop %v230
    %v235 = vadd.f32 %v231, 1.0
    %v236 = vadd.f32 %v232, 1.0
    %v237 = vadd.f32 %v233, 1.0
    %v238 = vadd.f32 %v234, 1.0
    %v239 = vmul.f32 %v235, 0.5
    %v240 = vmul.f32 %v236, 0.5
    %v241 = vmul.f32 %v237, 0.5
    %v242 = vmul.f32 %v238, 0.5
    %v243 = vpack.c.bf16 %v240, %v239
    %v244 = vpack.c.bf16 %v242, %v241
    %246 = vset.pattern.permute.xlu0 0
    %247 = vperm.xlu0 %246, %v36
    %v248 = vpop.permute.xlu0 %247
    %v251 = vsel %vm171, %v27, 0
    %253 = vmatprep.subr.bf16.mxu0 0
    %254 = vmatpush1.bf16.msra.mxu0 %v243
    %255 = vmatprep.subr.bf16.mxu0 0
    %256 = vmatpush1.bf16.msra.mxu0 %v244
    %257 = vmatprep.subr.bf16.mxu0 0
    %258 = vmatpush1.bf16.msra.mxu0 0
    %259 = vmatprep.subr.bf16.mxu0 0
    %260 = vmatpush1.bf16.msra.mxu0 0
    %261 = vmatprep.subr.bf16.mxu0 0
    %262 = vmatpush1.bf16.msra.mxu0 0
    %263 = vmatprep.subr.bf16.mxu0 0
    %264 = vmatpush1.bf16.msra.mxu0 0
    %265 = vmatprep.subr.bf16.mxu0 0
    %266 = vmatpush1.bf16.msra.mxu0 0
    %267 = vmatprep.subr.bf16.mxu0 0
    %268 = vmatpush1.bf16.msra.mxu0 0
    %269 = vmatprep.subr.bf16.mxu0 0
    %270 = vmatpush1.bf16.msra.mxu0 0
    %271 = vmatprep.subr.bf16.mxu0 0
    %272 = vmatpush1.bf16.msra.mxu0 0
    %273 = vmatprep.subr.bf16.mxu0 0
    %274 = vmatpush1.bf16.msra.mxu0 0
    %275 = vmatprep.subr.bf16.mxu0 0
    %276 = vmatpush1.bf16.msra.mxu0 0
    %277 = vmatprep.subr.bf16.mxu0 0
    %278 = vmatpush1.bf16.msra.mxu0 0
    %279 = vmatprep.subr.bf16.mxu0 0
    %280 = vmatpush1.bf16.msra.mxu0 0
    %281 = vmatprep.subr.bf16.mxu0 0
    %282 = vmatpush1.bf16.msra.mxu0 0
    %283 = vmatprep.subr.bf16.mxu0 0
    %284 = vmatpush1.bf16.msra.mxu0 0
    %285 = vmatprep.mubr.bf16.mxu0 0
    %286 = vmatmul.mubr.bf16.gmra.mrb[0].mxu0 %v251
    %v287 = vpop.f32.mrb[0].mxu0
    %v288 = vadd.f32 %v248, %v287
    %v289 = vpop.f32.mrb[0].mxu0
    %v290 = vpop.f32.mrb[0].mxu0
    %v291 = vpop.f32.mrb[0].mxu0
    %292 = vdwg.mxu0
    %vm293 = vcmask 60416
    %294 = vst.msk [vmem:[#allocation2] sm:$0xf] %vm293, %v288
    // Predicated region
    $region14: #{tpu_custom_call.1} parent=1 // pred_check
      _
    $region15: #{tpu_custom_call.1} parent=1 // pred_check_branch
      %296 = sbr.rel (0) target = $region17
    $region16: #{tpu_custom_call.1} parent=1 // pred_region
      %s298 = ssub.s32 64, 64
      %299 = vsyncadd [#allocation3], %s298
      %s301 = sshll.u32 [#allocation2], 4
      %s302 = int_to_ptr.vmem [resolvable:$true] %s301
      %304 = dma.vmem_to_hbm [thread:$0]  %s302, 64, %s3, [#allocation3]
    $region17: #{tpu_custom_call.1} parent=1 // pred_fallthru
      _
    // Predicated region
    $region18: #{tpu_custom_call.1} parent=1 // pred_check
      _
    $region19: #{tpu_custom_call.1} parent=1 // pred_check_branch
      %306 = sbr.rel (0) target = $region21
    $region20: #{tpu_custom_call.1} parent=1 // pred_region
      %307 = dma.done [#allocation3], 64
    $region21: #{tpu_custom_call.1} parent=1 // pred_fallthru
      _
    %308 = vsyncpa [#allocation3], 1

</llo_original>
